<compile_context>
chip_gen: v7x
topology: tpu7x:2x2x1
jax: 0.10.0
libtpu: 0.0.40
codegen_flags: <defaults>
</compile_context>

<pallas_src>
import functools

import jax
import jax.numpy as jnp
from jax.experimental import pallas as pl
from jax.experimental.pallas import tpu as pltpu

_LANE_PAD = 128   # lane offset of the image data inside the padded VMEM scratch
_ROW_PAD = 8      # sublane offset of the image data (keeps the bulk copy aligned)


def _sobelxy_kernel(x_ref, top_ref, bot_ref, o_ref, xe_ref, *, top_row, bot_row):
    """One (batch, row-tile) grid step.

    x_ref:   (1, TH, W)      current row tile of the image
    top_ref: (1, HALO_H, W)  block containing the row just above the tile
    bot_ref: (1, HALO_H, W)  block containing the row just below the tile
    o_ref:   (1, TH, W)      output tile
    xe_ref:  (TH + 2*_ROW_PAD, W + 2*_LANE_PAD) f32 scratch holding the
             zero-padded tile; image rows live at sublanes [_ROW_PAD, _ROW_PAD+TH)
             and lanes [_LANE_PAD, _LANE_PAD+W).
    """
    j = pl.program_id(1)
    nj = pl.num_programs(1)
    _, TH, W = x_ref.shape
    c0 = _LANE_PAD
    r0 = _ROW_PAD

    # Width zero-padding columns (conv2d padding=1).  Tiny masked column
    # stores, rewritten every step so no cross-step scratch state is needed.
    zcol = jnp.zeros((TH + 2, 1), jnp.float32)
    xe_ref[r0 - 1:r0 + TH + 1, c0 - 1:c0] = zcol
    xe_ref[r0 - 1:r0 + TH + 1, c0 + W:c0 + W + 1] = zcol

    # Halo rows: sliced straight from the refs; zeroed at the true image
    # top / bottom (height zero padding).
    top = jnp.where(j > 0, top_ref[0, top_row:top_row + 1, :], 0.0)
    bot = jnp.where(j < nj - 1, bot_ref[0, bot_row:bot_row + 1, :], 0.0)
    xe_ref[r0 - 1:r0, c0:c0 + W] = top
    xe_ref[r0 + TH:r0 + TH + 1, c0:c0 + W] = bot

    # Bulk copy: destination is 8-sublane and 128-lane aligned -> plain vst stream.
    xe_ref[r0:r0 + TH, c0:c0 + W] = x_ref[0]

    # Separable Sobel.  Per padded row r:
    #   A[r] = x[r, c+1] - x[r, c-1]
    #   B[r] = x[r, c-1] + 2*x[r, c] + x[r, c+1]
    # then sobelx[r] = A[r-1] + 2*A[r] + A[r+1],  sobely[r] = B[r-1] - B[r+1].
    xl = xe_ref[r0 - 1:r0 + TH + 1, c0 - 1:c0 + W - 1]
    xc = xe_ref[r0 - 1:r0 + TH + 1, c0:c0 + W]
    xr = xe_ref[r0 - 1:r0 + TH + 1, c0 + 1:c0 + W + 1]
    a = xr - xl                      # (TH + 2, W)
    b = (xl + xr) + 2.0 * xc         # (TH + 2, W)

    sobelx = (a[0:TH] + a[2:TH + 2]) + 2.0 * a[1:TH + 1]
    sobely = b[0:TH] - b[2:TH + 2]
    o_ref[0] = jnp.abs(sobelx) + jnp.abs(sobely)


def _vmem_budget_bytes():
    """~3/4 of physical VMEM per core: ~96 MiB on v5e/v6e, ~48 MiB on v7x."""
    phys = None
    try:
        phys = getattr(pltpu.get_tpu_info(), "vmem_capacity_bytes", None)
    except Exception:
        phys = None
    if not phys:
        phys = 64 * 1024 * 1024          # conservative default (v7x per-TC VMEM)
    return int(min(phys * 3 // 4, 112 * 1024 * 1024))


def _pick_row_tile(H, W, budget_bytes, *, live_slabs=14, max_rows=1024):
    """Largest multiple-of-8 divisor of H whose working set fits the budget.

    `live_slabs` ~= double-buffered in/out blocks + padded scratch + peak
    f32 temporaries, each of size TH*W*4 bytes.
    """
    if H % 8 != 0:
        return H                          # degenerate single-tile path
    bytes_per_row = W * 4 * live_slabs
    cap = min(max_rows, H, max(8, budget_bytes // bytes_per_row))
    d = (cap // 8) * 8
    while d >= 8:
        if H % d == 0:
            return d
        d -= 8
    return H


def sobelxy(x, *, row_tile=None):
    """Forward pass of Sobelxy.  x: (N, 1, H, W); returns same shape, float32."""
    N, C, H, W = x.shape
    assert C == 1, "Sobelxy conv weights have in_channels = out_channels = 1"
    B = N * C
    xf = x.reshape(B, H, W).astype(jnp.float32)

    vmem_budget = _vmem_budget_bytes()
    if row_tile is None:
        TH = _pick_row_tile(H, W, vmem_budget)
        # Keep the grid at >= 2 steps so both v7x TensorCores get work.
        while B * (H // TH) < 2 and TH % 16 == 0:
            TH //= 2
    else:
        TH = row_tile
    assert H % TH == 0, "row tile must divide H"
    n_row_tiles = H // TH

    # Height-halo blocks: 8-row blocks keep the (8, 128) block-shape rule; the
    # single needed row sits at a fixed offset inside that block.
    if H % 8 == 0 and TH % 8 == 0:
        halo_h, top_row, bot_row = 8, 7, 0
    else:
        # Degenerate single-tile case; halo rows are fully masked anyway.
        assert n_row_tiles == 1, "non multiple-of-8 tiles only supported untiled"
        halo_h, top_row, bot_row = H, 0, 0
    assert TH % halo_h == 0                # reviewer-flagged invariant
    R = TH // halo_h                       # halo blocks per row tile
    n_halo_blocks = H // halo_h

    main_spec = pl.BlockSpec((1, TH, W), lambda b, j: (b, j, 0))
    top_spec = pl.BlockSpec(
        (1, halo_h, W), lambda b, j: (b, jnp.maximum(j * R - 1, 0), 0))
    bot_spec = pl.BlockSpec(
        (1, halo_h, W),
        lambda b, j: (b, jnp.minimum((j + 1) * R, n_halo_blocks - 1), 0))

    out = pl.pallas_call(
        functools.partial(_sobelxy_kernel, top_row=top_row, bot_row=bot_row),
        out_shape=jax.ShapeDtypeStruct((B, H, W), jnp.float32),
        grid=(B, n_row_tiles),
        in_specs=[main_spec, top_spec, bot_spec],
        out_specs=pl.BlockSpec((1, TH, W), lambda b, j: (b, j, 0)),
        scratch_shapes=[
            pltpu.VMEM((TH + 2 * _ROW_PAD, W + 2 * _LANE_PAD), jnp.float32)],
        compiler_params=pltpu.CompilerParams(
            dimension_semantics=("parallel", "parallel"),
            vmem_limit_bytes=vmem_budget,
        ),
    )(xf, xf, xf)
    return out.reshape(N, C, H, W)


def _reference(x):
    # Deterministic, in-script Sobel weights (same as the module __init__).
    kx = jnp.array([[-1., 0., 1.], [-2., 0., 2.], [-1., 0., 1.]], jnp.float32)
    ky = jnp.array([[1., 2., 1.], [0., 0., 0.], [-1., -2., -1.]], jnp.float32)
    wx = kx[None, None]  # (1,1,3,3) OIHW
    wy = ky[None, None]
    dn = jax.lax.conv_dimension_numbers(x.shape, wx.shape, ("NCHW", "OIHW", "NCHW"))
    sx = jax.lax.conv_general_dilated(x, wx, (1, 1), [(1, 1), (1, 1)], dimension_numbers=dn)
    sy = jax.lax.conv_general_dilated(x, wy, (1, 1), [(1, 1), (1, 1)], dimension_numbers=dn)
    return jnp.abs(sx) + jnp.abs(sy)


if __name__ == "__main__":
    key = jax.random.PRNGKey(0)
    x = jax.random.normal(key, (2, 1, 16, 16), dtype=jnp.float32)
    ref = _reference(x)

    # Auto tile size (single row tile per image at this small H).
    out = jax.block_until_ready(sobelxy(x))
    assert out.shape == (2, 1, 16, 16)
    assert jnp.allclose(out, ref, atol=1e-5, rtol=1e-5), "mismatch (auto-tile path)"

    # Forced 8-row tiles -> exercises the cross-tile height halo path.
    out_tiled = jax.block_until_ready(sobelxy(x, row_tile=8))
    assert jnp.allclose(out_tiled, ref, atol=1e-5, rtol=1e-5), "mismatch (row-tiled path)"

    # Wider, lane-aligned image exercising the auto row-tiling + halo path.
    x2 = jax.random.normal(jax.random.PRNGKey(0), (1, 1, 32, 256), dtype=jnp.float32)
    out2 = jax.block_until_ready(sobelxy(x2))
    assert jnp.allclose(out2, _reference(x2), atol=1e-5, rtol=1e-5), "mismatch (wide path)"

    print("KERNEL_OK")
</pallas_src>

<mosaic_0001>
module attributes {stable_mosaic.version = 11 : i64} {
  func.func @_sobelxy_kernel(%arg0: i32, %arg1: i32, %arg2: memref<1x16x16xf32, #tpu.memory_space<vmem>>, %arg3: memref<1x8x16xf32, #tpu.memory_space<vmem>>, %arg4: memref<1x8x16xf32, #tpu.memory_space<vmem>>, %arg5: memref<1x16x16xf32, #tpu.memory_space<vmem>>, %arg6: memref<32x272xf32, #tpu.memory_space<vmem>>) attributes {dimension_semantics = [#tpu.dimension_semantics<parallel>, #tpu.dimension_semantics<parallel>], iteration_bounds = array<i64: 2, 1>, scalar_prefetch = 0 : i64, scratch_operands = 1 : i64, tpu.core_type = #tpu.core_type<tc>, window_params = [{transform_indices = @transform_0, window_bounds = array<i64: 1, 16, 16>}, {transform_indices = @transform_1, window_bounds = array<i64: 1, 8, 16>}, {transform_indices = @transform_2, window_bounds = array<i64: 1, 8, 16>}, {transform_indices = @transform_3, window_bounds = array<i64: 1, 16, 16>}]} {
    %cst = arith.constant 0.000000e+00 : f32
    %0 = vector.broadcast %cst : f32 to vector<18x1xf32>
    %c7 = arith.constant 7 : index
    %c127 = arith.constant 127 : index
    %1 = vector.load %arg6[%c7, %c127] : memref<32x272xf32, #tpu.memory_space<vmem>>, vector<18x1xf32>
    tpu.vector_store %arg6[%c7, %c127], %0 {strides = array<i32>} : memref<32x272xf32, #tpu.memory_space<vmem>>, vector<18x1xf32>,
    %c7_0 = arith.constant 7 : index
    %c144 = arith.constant 144 : index
    %2 = vector.load %arg6[%c7_0, %c144] : memref<32x272xf32, #tpu.memory_space<vmem>>, vector<18x1xf32>
    tpu.vector_store %arg6[%c7_0, %c144], %0 {strides = array<i32>} : memref<32x272xf32, #tpu.memory_space<vmem>>, vector<18x1xf32>,
    %c0_i32 = arith.constant 0 : i32
    %3 = arith.cmpi sgt, %arg1, %c0_i32 : i32
    %c0 = arith.constant 0 : index
    %c7_1 = arith.constant 7 : index
    %c0_2 = arith.constant 0 : index
    %4 = vector.load %arg3[%c0, %c7_1, %c0_2] : memref<1x8x16xf32, #tpu.memory_space<vmem>>, vector<1x1x16xf32>
    %5 = vector.shape_cast %4 : vector<1x1x16xf32> to vector<1x16xf32>
    %cst_3 = arith.constant 0.000000e+00 : f32
    %6 = vector.broadcast %cst_3 : f32 to vector<1x16xf32>
    %7 = arith.select %3, %5, %6 : vector<1x16xf32>
    %c0_i32_4 = arith.constant 0 : i32
    %8 = arith.cmpi slt, %arg1, %c0_i32_4 : i32
    %c0_5 = arith.constant 0 : index
    %c0_6 = arith.constant 0 : index
    %c0_7 = arith.constant 0 : index
    %9 = vector.load %arg4[%c0_5, %c0_6, %c0_7] : memref<1x8x16xf32, #tpu.memory_space<vmem>>, vector<1x1x16xf32>
    %10 = vector.shape_cast %9 : vector<1x1x16xf32> to vector<1x16xf32>
    %cst_8 = arith.constant 0.000000e+00 : f32
    %11 = vector.broadcast %cst_8 : f32 to vector<1x16xf32>
    %12 = arith.select %8, %10, %11 : vector<1x16xf32>
    %c7_9 = arith.constant 7 : index
    %c128 = arith.constant 128 : index
    %13 = vector.load %arg6[%c7_9, %c128] : memref<32x272xf32, #tpu.memory_space<vmem>>, vector<1x16xf32>
    tpu.vector_store %arg6[%c7_9, %c128], %7 {strides = array<i32>} : memref<32x272xf32, #tpu.memory_space<vmem>>, vector<1x16xf32>,
    %c24 = arith.constant 24 : index
    %c128_10 = arith.constant 128 : index
    %14 = vector.load %arg6[%c24, %c128_10] : memref<32x272xf32, #tpu.memory_space<vmem>>, vector<1x16xf32>
    tpu.vector_store %arg6[%c24, %c128_10], %12 {strides = array<i32>} : memref<32x272xf32, #tpu.memory_space<vmem>>, vector<1x16xf32>,
    %c0_11 = arith.constant 0 : index
    %c0_12 = arith.constant 0 : index
    %c0_13 = arith.constant 0 : index
    %15 = vector.load %arg2[%c0_11, %c0_12, %c0_13] : memref<1x16x16xf32, #tpu.memory_space<vmem>>, vector<1x16x16xf32>
    %16 = vector.shape_cast %15 : vector<1x16x16xf32> to vector<16x16xf32>
    %c8 = arith.constant 8 : index
    %c128_14 = arith.constant 128 : index
    %17 = vector.load %arg6[%c8, %c128_14] : memref<32x272xf32, #tpu.memory_space<vmem>>, vector<16x16xf32>
    tpu.vector_store %arg6[%c8, %c128_14], %16 {strides = array<i32>} : memref<32x272xf32, #tpu.memory_space<vmem>>, vector<16x16xf32>,
    %c7_15 = arith.constant 7 : index
    %c127_16 = arith.constant 127 : index
    %18 = vector.load %arg6[%c7_15, %c127_16] : memref<32x272xf32, #tpu.memory_space<vmem>>, vector<18x16xf32>
    %c7_17 = arith.constant 7 : index
    %c128_18 = arith.constant 128 : index
    %19 = vector.load %arg6[%c7_17, %c128_18] : memref<32x272xf32, #tpu.memory_space<vmem>>, vector<18x16xf32>
    %c7_19 = arith.constant 7 : index
    %c129 = arith.constant 129 : index
    %20 = vector.load %arg6[%c7_19, %c129] : memref<32x272xf32, #tpu.memory_space<vmem>>, vector<18x16xf32>
    %21 = arith.subf %20, %18 : vector<18x16xf32>
    %22 = arith.addf %18, %20 : vector<18x16xf32>
    %cst_20 = arith.constant 2.000000e+00 : f32
    %23 = vector.broadcast %cst_20 : f32 to vector<18x16xf32>
    %24 = arith.mulf %23, %19 : vector<18x16xf32>
    %25 = arith.addf %22, %24 : vector<18x16xf32>
    %26 = vector.extract_strided_slice %21 {offsets = [0, 0], sizes = [16, 16], strides = [1, 1]} : vector<18x16xf32> to vector<16x16xf32>
    %27 = vector.extract_strided_slice %21 {offsets = [2, 0], sizes = [16, 16], strides = [1, 1]} : vector<18x16xf32> to vector<16x16xf32>
    %28 = arith.addf %26, %27 : vector<16x16xf32>
    %29 = vector.extract_strided_slice %21 {offsets = [1, 0], sizes = [16, 16], strides = [1, 1]} : vector<18x16xf32> to vector<16x16xf32>
    %cst_21 = arith.constant 2.000000e+00 : f32
    %30 = vector.broadcast %cst_21 : f32 to vector<16x16xf32>
    %31 = arith.mulf %30, %29 : vector<16x16xf32>
    %32 = arith.addf %28, %31 : vector<16x16xf32>
    %33 = vector.extract_strided_slice %25 {offsets = [0, 0], sizes = [16, 16], strides = [1, 1]} : vector<18x16xf32> to vector<16x16xf32>
    %34 = vector.extract_strided_slice %25 {offsets = [2, 0], sizes = [16, 16], strides = [1, 1]} : vector<18x16xf32> to vector<16x16xf32>
    %35 = arith.subf %33, %34 : vector<16x16xf32>
    %36 = math.absf %32 : vector<16x16xf32>
    %37 = math.absf %35 : vector<16x16xf32>
    %38 = arith.addf %36, %37 : vector<16x16xf32>
    %c0_22 = arith.constant 0 : index
    %c0_23 = arith.constant 0 : index
    %c0_24 = arith.constant 0 : index
    %39 = vector.load %arg5[%c0_22, %c0_23, %c0_24] : memref<1x16x16xf32, #tpu.memory_space<vmem>>, vector<1x16x16xf32>
    %40 = vector.shape_cast %39 : vector<1x16x16xf32> to vector<16x16xf32>
    %41 = vector.shape_cast %38 : vector<16x16xf32> to vector<1x16x16xf32>
    tpu.vector_store %arg5[%c0_22, %c0_23, %c0_24], %41 {strides = array<i32>} : memref<1x16x16xf32, #tpu.memory_space<vmem>>, vector<1x16x16xf32>,
    return
  }
  func.func @transform_0(%arg0: i32, %arg1: i32) -> (i32, i32, i32) {
    %c0_i32 = arith.constant 0 : i32
    %c0_i32_0 = arith.constant 0 : i32
    return %arg0, %arg1, %c0_i32 : i32, i32, i32
  }
  func.func @transform_1(%arg0: i32, %arg1: i32) -> (i32, i32, i32) {
    %c2_i32 = arith.constant 2 : i32
    %0 = arith.muli %arg1, %c2_i32 : i32
    %c1_i32 = arith.constant 1 : i32
    %1 = arith.subi %0, %c1_i32 : i32
    %c0_i32 = arith.constant 0 : i32
    %2 = arith.maxsi %1, %c0_i32 : i32
    %c0_i32_0 = arith.constant 0 : i32
    %c0_i32_1 = arith.constant 0 : i32
    return %arg0, %2, %c0_i32_0 : i32, i32, i32
  }
  func.func @transform_2(%arg0: i32, %arg1: i32) -> (i32, i32, i32) {
    %c1_i32 = arith.constant 1 : i32
    %0 = arith.addi %arg1, %c1_i32 : i32
    %c2_i32 = arith.constant 2 : i32
    %1 = arith.muli %0, %c2_i32 : i32
    %c1_i32_0 = arith.constant 1 : i32
    %2 = arith.minsi %1, %c1_i32_0 : i32
    %c0_i32 = arith.constant 0 : i32
    %c0_i32_1 = arith.constant 0 : i32
    return %arg0, %2, %c0_i32 : i32, i32, i32
  }
  func.func @transform_3(%arg0: i32, %arg1: i32) -> (i32, i32, i32) {
    %c0_i32 = arith.constant 0 : i32
    %c0_i32_0 = arith.constant 0 : i32
    return %arg0, %arg1, %c0_i32 : i32, i32, i32
  }
}

</mosaic_0001>

<llo_original>
// kernel: tpu_custom_call.1
$region0: #{tpu_custom_call.1}
  #allocation0 [shape = 'u32[]', space=smem, size = 0x4, offset = 0x4, fixed_abs, tag = 'smem constant byte address 0x4 - core index']
  #allocation1 [shape = 'u32[144,128]{1,0:T(1,128)}', space=vmem, size = 0x12000, scoped, tag = 'internal scratch']
  #allocation2 [shape = 'f32[32,272]{1,0:T(8,128)}', space=vmem, size = 0xc000, scoped, tag = 'scratch operand']
  %s0 = inlined_call_operand.hbm [shape: f32[2,16,16], index: 0, kind: input, shape index: {}]
  %s1 = inlined_call_operand.hbm [shape: f32[2,16,16], index: 1, kind: input, shape index: {}]
  %s2 = inlined_call_operand.hbm [shape: f32[2,16,16], index: 2, kind: input, shape index: {}]
  %s3 = inlined_call_operand.hbm [shape: f32[2,16,16], index: 3, kind: output, shape index: {}]
  %s4 = sld [smem:[#allocation0]]
  $region57: #{tpu_custom_call.1} parent=0
    _
  %s6 = ssub.s32 1, %s4
  %s7 = scalar_select 0, %s6, %s4
  $region1: #{tpu_custom_call.1} parent=0
    #allocation3 [shape = 'u8[16384]{0}', space=vmem, size = 0x4000, scoped, tag = 'input window, operand 0']
    #allocation4 [shape = 's32[2]{0}', space=sflag, size = 0x8, scoped, tag = 'scoped memory for tpu_custom_call.1']
    #allocation5 [shape = 's32[2]{0}', space=sflag, size = 0x8, scoped, tag = 'scoped memory for tpu_custom_call.1']
    #allocation6 [shape = 'u8[8192]{0}', space=vmem, size = 0x2000, scoped, tag = 'input window, operand 1']
    #allocation7 [shape = 's32[2]{0}', space=sflag, size = 0x8, scoped, tag = 'scoped memory for tpu_custom_call.1']
    #allocation8 [shape = 'u8[8192]{0}', space=vmem, size = 0x2000, scoped, tag = 'input window, operand 2']
    #allocation9 [shape = 'u8[16384]{0}', space=vmem, size = 0x4000, scoped, tag = 'output window, operand 0']
    %8 = vsyncpa [#allocation4], 0
    %s9 = scalar_lea.sflag [#allocation4], 1
    %10 = vsyncpa %s9, 0
    %11 = vsyncpa [#allocation7], 0
    %s12 = scalar_lea.sflag [#allocation7], 1
    %13 = vsyncpa %s12, 0
    %14 = vsyncpa [#allocation5], 0
    %s15 = scalar_lea.sflag [#allocation5], 1
    %16 = vsyncpa %s15, 0
    loop: start=0, step=1, limit=4
    $region2: #{tpu_custom_call.1} parent=1 // loop_pre_header
      _
    $region3: #{tpu_custom_call.1} parent=1 // loop_header
      %s18 = sphi 0, %s22
      %p19 = scmp.ge.s32.totalorder %s18, 4
      %s25 = sphi 0, %s37
      %s26 = sphi 0, %s33
      %s27 = sphi 0, %s25
      %s28 = sphi 0, %s26
      %s29 = sphi 0, %s27
      %s30 = sphi 0, %s28
      %s42 = sphi 0, %s44
      %s45 = sphi 0, %s42
      %s46 = sphi 0, %s45
      %s62 = sphi 0, %s46
      %s78 = sphi 0, %s80
      %s81 = sphi 0, %s78
      %s82 = sphi 0, %s81
      %s98 = sphi 0, %s82
      %s114 = sphi 0, %s116
      %s117 = sphi 0, %s114
      %s118 = sphi 0, %s117
      %s134 = sphi 0, %s118
      %s142 = sphi 0, %s144
      %s145 = sphi 0, %s142
      %s146 = sphi 0, %s145
      %s162 = sphi 0, %s146
    $region4: #{tpu_custom_call.1} parent=1 // loop_header_branch
      %21 = sbr.rel (%p19) target = $region8
    $region5: #{tpu_custom_call.1} parent=1 // loop_body
      %s23 = ssub.s32 %s18, 1
      %s24 = ssub.s32 %s18, 2
      %s31 = sadd.s32 1, %s26
      %p32 = scmp.ge.s32.totalorder %s31, 1
      %s33 = scalar_select %p32, 0, %s31
      %s34 = sadd.s32 1, %s25
      %s35 = scalar_select %p32, %s34, %s25
      %p36 = scmp.ge.s32.totalorder %s35, 2
      %s37 = scalar_select %p36, 0, %s35
      %s38 = ssub.s32 %s25, %s37
      %s39 = ssub.s32 %s26, %s33
      %s40 = sor.u32 %s38, %s39
      %p41 = scmp.eq.s32.totalorder %s40, 0
      %s43 = sadd.s32 %s42, 1
      %s44 = scalar_select %p41, %s42, %s43
      %p47 = pneg %p41
      %p48 = scmp.eq.s32.totalorder %s18, 1
      %p49 = por %p47, %p48
      %p50 = scmp.ne.s32.totalorder %s42, %s45
      %p51 = scmp.eq.s32.totalorder %s18, 0
      %p52 = por %p50, %p51
      %p53 = scmp.ne.s32.totalorder %s42, %s45
      %p54 = scmp.eq.s32.totalorder %s23, 1
      %p55 = por %p53, %p54
      %p56 = scmp.ne.s32.totalorder %s45, %s46
      %p57 = scmp.eq.s32.totalorder %s23, 0
      %p58 = por %p56, %p57
      %p59 = scmp.ne.s32.totalorder %s45, %s46
      %p60 = scmp.eq.s32.totalorder %s24, 1
      %p61 = por %p59, %p60
      %p63 = scmp.ne.s32.totalorder %s46, %s62
      %p64 = scmp.eq.s32.totalorder %s24, 0
      %p65 = por %p63, %p64
      %s66 = smul.u32 %s26, 2
      %s67 = ssub.s32 %s66, 1
      %p68 = scmp.gt.s32.totalorder %s67, 0
      %s69 = scalar_select %p68, %s67, 0
      %s70 = smul.u32 %s33, 2
      %s71 = ssub.s32 %s70, 1
      %p72 = scmp.gt.s32.totalorder %s71, 0
      %s73 = scalar_select %p72, %s71, 0
      %s74 = ssub.s32 %s25, %s37
      %s75 = ssub.s32 %s69, %s73
      %s76 = sor.u32 %s74, %s75
      %p77 = scmp.eq.s32.totalorder %s76, 0
      %s79 = sadd.s32 %s78, 1
      %s80 = scalar_select %p77, %s78, %s79
      %p83 = pneg %p77
      %p84 = scmp.eq.s32.totalorder %s18, 1
      %p85 = por %p83, %p84
      %p86 = scmp.ne.s32.totalorder %s78, %s81
      %p87 = scmp.eq.s32.totalorder %s18, 0
      %p88 = por %p86, %p87
      %p89 = scmp.ne.s32.totalorder %s78, %s81
      %p90 = scmp.eq.s32.totalorder %s23, 1
      %p91 = por %p89, %p90
      %p92 = scmp.ne.s32.totalorder %s81, %s82
      %p93 = scmp.eq.s32.totalorder %s23, 0
      %p94 = por %p92, %p93
      %p95 = scmp.ne.s32.totalorder %s81, %s82
      %p96 = scmp.eq.s32.totalorder %s24, 1
      %p97 = por %p95, %p96
      %p99 = scmp.ne.s32.totalorder %s82, %s98
      %p100 = scmp.eq.s32.totalorder %s24, 0
      %p101 = por %p99, %p100
      %s102 = sadd.s32 %s26, 1
      %s103 = smul.u32 %s102, 2
      %p104 = scmp.lt.s32.totalorder %s103, 1
      %s105 = scalar_select %p104, %s103, 1
      %s106 = sadd.s32 %s33, 1
      %s107 = smul.u32 %s106, 2
      %p108 = scmp.lt.s32.totalorder %s107, 1
      %s109 = scalar_select %p108, %s107, 1
      %s110 = ssub.s32 %s25, %s37
      %s111 = ssub.s32 %s105, %s109
      %s112 = sor.u32 %s110, %s111
      %p113 = scmp.eq.s32.totalorder %s112, 0
      %s115 = sadd.s32 %s114, 1
      %s116 = scalar_select %p113, %s114, %s115
      %p119 = pneg %p113
      %p120 = scmp.eq.s32.totalorder %s18, 1
      %p121 = por %p119, %p120
      %p122 = scmp.ne.s32.totalorder %s114, %s117
      %p123 = scmp.eq.s32.totalorder %s18, 0
      %p124 = por %p122, %p123
      %p125 = scmp.ne.s32.totalorder %s114, %s117
      %p126 = scmp.eq.s32.totalorder %s23, 1
      %p127 = por %p125, %p126
      %p128 = scmp.ne.s32.totalorder %s117, %s118
      %p129 = scmp.eq.s32.totalorder %s23, 0
      %p130 = por %p128, %p129
      %p131 = scmp.ne.s32.totalorder %s117, %s118
      %p132 = scmp.eq.s32.totalorder %s24, 1
      %p133 = por %p131, %p132
      %p135 = scmp.ne.s32.totalorder %s118, %s134
      %p136 = scmp.eq.s32.totalorder %s24, 0
      %p137 = por %p135, %p136
      %s138 = ssub.s32 %s25, %s37
      %s139 = ssub.s32 %s26, %s33
      %s140 = sor.u32 %s138, %s139
      %p141 = scmp.eq.s32.totalorder %s140, 0
      %s143 = sadd.s32 %s142, 1
      %s144 = scalar_select %p141, %s142, %s143
      %p147 = pneg %p141
      %p148 = scmp.eq.s32.totalorder %s18, 1
      %p149 = por %p147, %p148
      %p150 = scmp.ne.s32.totalorder %s142, %s145
      %p151 = scmp.eq.s32.totalorder %s18, 0
      %p152 = por %p150, %p151
      %p153 = scmp.ne.s32.totalorder %s142, %s145
      %p154 = scmp.eq.s32.totalorder %s23, 1
      %p155 = por %p153, %p154
      %p156 = scmp.ne.s32.totalorder %s145, %s146
      %p157 = scmp.eq.s32.totalorder %s23, 0
      %p158 = por %p156, %p157
      %p159 = scmp.ne.s32.totalorder %s145, %s146
      %p160 = scmp.eq.s32.totalorder %s24, 1
      %p161 = por %p159, %p160
      %p163 = scmp.ne.s32.totalorder %s146, %s162
      %p164 = scmp.eq.s32.totalorder %s24, 0
      %p165 = por %p163, %p164
      %p166 = scmp.le.s32.totalorder 1, %s18
      %p167 = scmp.lt.s32.totalorder %s18, 3
      %p168 = pnand %p166, %p167
      %p169 = pneg %p168
      // Predicated region
      $region9: #{tpu_custom_call.1} parent=5 // pred_check
        _
      $region10: #{tpu_custom_call.1} parent=5 // pred_check_branch
        %171 = sbr.rel (%p168) target = $region12
      $region11: #{tpu_custom_call.1} parent=5 // pred_region
        %s172 = ssub.s32 %s18, 1
      $region12: #{tpu_custom_call.1} parent=5 // pred_fallthru
        _
      %p173 = scmp.lt.s32.totalorder %s18, 2
      // Predicated region
      $region13: #{tpu_custom_call.1} parent=5 // pred_check
        %p174 = pneg %p173
      $region14: #{tpu_custom_call.1} parent=5 // pred_check_branch
        %176 = sbr.rel (%p174) target = $region16
      $region15: #{tpu_custom_call.1} parent=5 // pred_region
        // Predicated region
        $region17: #{tpu_custom_call.1} parent=15 // pred_check
          %p177 = pneg %p52
        $region18: #{tpu_custom_call.1} parent=15 // pred_check_branch
          %179 = sbr.rel (%p177) target = $region20
        $region19: #{tpu_custom_call.1} parent=15 // pred_region
          %s180 = sand.u32 %s42, 1
          %s181 = scalar_lea.sflag [#allocation4], %s180
          %s182 = sand.u32 %s42, 1
          %s183 = smul.addr %s182, 16
          %s184 = scalar_lea.vmem [#allocation3], %s183
          %s185 = smul.u32 2, %s26
          %s187 = ssub.s32 256, 256
          %188 = vsyncadd %s181, %s187
          %s189 = smul.addr %s25, 2
          %s190 = sadd.s32 %s185, %s189
          %s191 = smul.addr %s190, 128
          %s192 = scalar_lea.hbm %s0, %s191
          %s193 = sshll.u32 %s184, 4
          %s194 = int_to_ptr.vmem [resolvable:$true] %s193
          %199 = dma.hbm_to_vmem [thread:$0]  %s192, 256, %s194, %s181, 128, 128, 8
        $region20: #{tpu_custom_call.1} parent=15 // pred_fallthru
          _
        // Predicated region
        $region21: #{tpu_custom_call.1} parent=15 // pred_check
          %p200 = pneg %p88
        $region22: #{tpu_custom_call.1} parent=15 // pred_check_branch
          %202 = sbr.rel (%p200) target = $region24
        $region23: #{tpu_custom_call.1} parent=15 // pred_region
          %s203 = sand.u32 %s18, 1
          %s204 = scalar_lea.sflag [#allocation7], %s203
          %s205 = sand.u32 %s78, 1
          %s206 = smul.addr %s205, 8
          %s207 = scalar_lea.vmem [#allocation6], %s206
          %s208 = smul.u32 %s26, 2
          %s209 = ssub.s32 %s208, 1
          %p210 = scmp.gt.s32.totalorder %s209, 0
          %s211 = scalar_select %p210, %s209, 0
          %s213 = ssub.s32 128, 128
          %214 = vsyncadd %s204, %s213
          %s215 = smul.addr %s25, 2
          %s216 = sadd.s32 %s211, %s215
          %s217 = smul.addr %s216, 128
          %s218 = scalar_lea.hbm %s1, %s217
          %s220 = sshll.u32 %s207, 4
          %s221 = int_to_ptr.vmem [resolvable:$true] %s220
          %223 = dma.hbm_to_vmem [thread:$0]  %s218, 128, %s221, %s204
        $region24: #{tpu_custom_call.1} parent=15 // pred_fallthru
          _
        // Predicated region
        $region25: #{tpu_custom_call.1} parent=15 // pred_check
          %p224 = pneg %p124
        $region26: #{tpu_custom_call.1} parent=15 // pred_check_branch
          %226 = sbr.rel (%p224) target = $region28
        $region27: #{tpu_custom_call.1} parent=15 // pred_region
          %s227 = sand.u32 %s18, 1
          %s228 = scalar_lea.sflag [#allocation7], %s227
          %s229 = sand.u32 %s114, 1
          %s230 = smul.addr %s229, 8
          %s231 = scalar_lea.vmem [#allocation8], %s230
          %s232 = sadd.s32 %s26, 1
          %s233 = smul.u32 %s232, 2
          %p234 = scmp.lt.s32.totalorder %s233, 1
          %s235 = scalar_select %p234, %s233, 1
          %s237 = ssub.s32 128, 128
          %238 = vsyncadd %s228, %s237
          %s239 = smul.addr %s25, 2
          %s240 = sadd.s32 %s235, %s239
          %s241 = smul.addr %s240, 128
          %s242 = scalar_lea.hbm %s2, %s241
          %s244 = sshll.u32 %s231, 4
          %s245 = int_to_ptr.vmem [resolvable:$true] %s244
          %247 = dma.hbm_to_vmem [thread:$0]  %s242, 128, %s245, %s228
        $region28: #{tpu_custom_call.1} parent=15 // pred_fallthru
          _
      $region16: #{tpu_custom_call.1} parent=5 // pred_fallthru
        _
      %p248 = scmp.le.s32.totalorder 1, %s18
      %p249 = scmp.lt.s32.totalorder %s18, 3
      %p250 = pnand %p248, %p249
      %p251 = pneg %p250
      // Predicated region
      $region29: #{tpu_custom_call.1} parent=5 // pred_check
        _
      $region30: #{tpu_custom_call.1} parent=5 // pred_check_branch
        %253 = sbr.rel (%p250) target = $region32
      $region31: #{tpu_custom_call.1} parent=5 // pred_region
        %s254 = ssub.s32 %s18, 1
        %s255 = sand.u32 %s45, 1
        %s256 = scalar_lea.sflag [#allocation4], %s255
        %s257 = sand.u32 %s45, 1
        %s258 = smul.addr %s257, 16
        %s259 = scalar_lea.vmem [#allocation3], %s258
        // Predicated region
        $region33: #{tpu_custom_call.1} parent=31 // pred_check
          %p260 = pneg %p58
        $region34: #{tpu_custom_call.1} parent=31 // pred_check_branch
          %262 = sbr.rel (%p260) target = $region36
        $region35: #{tpu_custom_call.1} parent=31 // pred_region
          %263 = dma.done %s256, 256
        $region36: #{tpu_custom_call.1} parent=31 // pred_fallthru
          _
        %s264 = sand.u32 %s23, 1
        %s265 = scalar_lea.sflag [#allocation7], %s264
        %s266 = sand.u32 %s81, 1
        %s267 = smul.addr %s266, 8
        %s268 = scalar_lea.vmem [#allocation6], %s267
        // Predicated region
        $region37: #{tpu_custom_call.1} parent=31 // pred_check
          %p269 = pneg %p94
        $region38: #{tpu_custom_call.1} parent=31 // pred_check_branch
          %271 = sbr.rel (%p269) target = $region40
        $region39: #{tpu_custom_call.1} parent=31 // pred_region
          %272 = dma.done %s265, 128
        $region40: #{tpu_custom_call.1} parent=31 // pred_fallthru
          _
        %s273 = sand.u32 %s23, 1
        %s274 = scalar_lea.sflag [#allocation7], %s273
        %s275 = sand.u32 %s117, 1
        %s276 = smul.addr %s275, 8
        %s277 = scalar_lea.vmem [#allocation8], %s276
        // Predicated region
        $region41: #{tpu_custom_call.1} parent=31 // pred_check
          %p278 = pneg %p130
        $region42: #{tpu_custom_call.1} parent=31 // pred_check_branch
          %280 = sbr.rel (%p278) target = $region44
        $region43: #{tpu_custom_call.1} parent=31 // pred_region
          %281 = dma.done %s274, 128
        $region44: #{tpu_custom_call.1} parent=31 // pred_fallthru
          _
        %s282 = sand.u32 %s45, 1
        %s283 = scalar_lea.sflag [#allocation4], %s282
        %s284 = sand.u32 %s45, 1
        %s285 = smul.addr %s284, 16
        %s286 = scalar_lea.vmem [#allocation3], %s285
        %p287 = pneg %p58
        %p288 = pneg %p55
        %s289 = sand.u32 %s23, 1
        %s290 = scalar_lea.sflag [#allocation7], %s289
        %s291 = sand.u32 %s81, 1
        %s292 = smul.addr %s291, 8
        %s293 = scalar_lea.vmem [#allocation6], %s292
        %p294 = pneg %p94
        %p295 = pneg %p91
        %s296 = sand.u32 %s23, 1
        %s297 = scalar_lea.sflag [#allocation7], %s296
        %s298 = sand.u32 %s117, 1
        %s299 = smul.addr %s298, 8
        %s300 = scalar_lea.vmem [#allocation8], %s299
        %p301 = pneg %p130
        %p302 = pneg %p127
        %p303 = pneg %p158
        %p304 = pneg %p155
        %s305 = sand.u32 %s145, 1
        %s306 = scalar_lea.sflag [#allocation5], %s305
        %s307 = sand.u32 %s145, 1
        %s308 = smul.addr %s307, 16
        %s309 = scalar_lea.vmem [#allocation9], %s308
        %s310 = smul.u32 2, %s28
        %s311 = smul.u32 %s28, 2
        %s312 = ssub.s32 %s311, 1
        %p313 = scmp.gt.s32.totalorder %s312, 0
        %s314 = scalar_select %p313, %s312, 0
        %s315 = sadd.s32 %s28, 1
        %s316 = smul.u32 %s315, 2
        %p317 = scmp.lt.s32.totalorder %s316, 1
        %s318 = scalar_select %p317, %s316, 1
        %s319 = smul.u32 2, %s28
        %vm320 = vcmask 1048575
        %321 = vst.msk [vmem:[#allocation2] sm:$0x80] %vm320, 0.0
        %vm322 = vcmask 1048568
        %323 = vst.msk [vmem:[#allocation2 + $0x18] sm:$0xff] %vm322, 0.0
        %324 = vst.msk [vmem:[#allocation2 + $0x30] sm:$0xff] %vm322, 0.0
        %vm325 = vcmask 1041400
        %326 = vst.msk [vmem:[#allocation2 + $0x48] sm:$0x1] %vm325, 0.0
        %vm327 = vcmask 138375
        %328 = vst.msk [vmem:[#allocation2 + $0x8] sm:$0x80] %vm327, 0.0
        %vm329 = vcmask 138368
        %330 = vst.msk [vmem:[#allocation2 + $0x20] sm:$0xff] %vm329, 0.0
        %331 = vst.msk [vmem:[#allocation2 + $0x38] sm:$0xff] %vm329, 0.0
        %vm332 = vcmask 131200
        %333 = vst.msk [vmem:[#allocation2 + $0x50] sm:$0x1] %vm332, 0.0
        %p334 = scmp.gt.s32.totalorder %s28, 0
        %v335 = vld [vmem:[%s268 + $0x7] sm:$0x1]
        %s336 = scalar_select %p334, 1, 0
        %v337 = vstv %s336
        %vm338 = vcmp.eq.s32.totalorder %v337, 1
        %v339 = vsel %vm338, %v335, 0.0
        %p340 = scmp.lt.s32.totalorder %s28, 0
        %v341 = vld [vmem:[%s277] sm:$0x1]
        %s342 = scalar_select %p340, 1, 0
        %v343 = vstv %s342
        %vm344 = vcmp.eq.s32.totalorder %v343, 1
        %v345 = vsel %vm344, %v341, 0.0
        %vm346 = vcmask 122880
        %347 = vst.msk [vmem:[#allocation2 + $0xf] sm:$0x1] %vm346, %v339
        %348 = vst.msk [vmem:[#allocation2 + $0x50] sm:$0x1] %vm346, %v345
        %v349 = vld [vmem:[%s259] sm:$0xff]
        %v350 = vld [vmem:[%s259 + $0x8] sm:$0xff]
        %vm351 = vcmask 130048
        %352 = vst.msk [vmem:[#allocation2 + $0x20] sm:$0xff] %vm351, %v349
        %353 = vst.msk [vmem:[#allocation2 + $0x38] sm:$0xff] %vm351, %v350
        %v354 = vld [vmem:[#allocation2] sm:$0x80]
        %v355 = vld [vmem:[#allocation2 + $0x8] sm:$0x80]
        %v356 = vld [vmem:[#allocation2 + $0x18] sm:$0xff]
        %v357 = vld [vmem:[#allocation2 + $0x20] sm:$0xff]
        %v358 = vld [vmem:[#allocation2 + $0x30] sm:$0xff]
        %v359 = vld [vmem:[#allocation2 + $0x38] sm:$0xff]
        %v360 = vld [vmem:[#allocation2 + $0x48] sm:$0x1]
        %v361 = vld [vmem:[#allocation2 + $0x50] sm:$0x1]
        %370 = vrot.lane.b32.xlu0 %v354, 2
        %v371 = vpop.permute.xlu0 %370
        %372 = vrot.lane.b32.xlu0 %v355, 2
        %v373 = vpop.permute.xlu0 %372
        %374 = vrot.lane.b32.xlu0 %v356, 2
        %v375 = vpop.permute.xlu0 %374
        %376 = vrot.lane.b32.xlu0 %v357, 2
        %v377 = vpop.permute.xlu0 %376
        %378 = vrot.lane.b32.xlu0 %v358, 2
        %v379 = vpop.permute.xlu0 %378
        %380 = vrot.lane.b32.xlu0 %v359, 2
        %v381 = vpop.permute.xlu0 %380
        %382 = vrot.lane.b32.xlu0 %v360, 2
        %v383 = vpop.permute.xlu0 %382
        %384 = vrot.lane.b32.xlu0 %v361, 2
        %v385 = vpop.permute.xlu0 %384
        %vm386 = vcmask 15360
        %v387 = vsel %vm386, %v371, %v373
        %v388 = vsel %vm386, %v375, %v377
        %v389 = vsel %vm386, %v379, %v381
        %v390 = vsel %vm386, %v383, %v385
        %v395 = vsub.f32 %v355, %v387
        %v396 = vsub.f32 %v357, %v388
        %v397 = vsub.f32 %v359, %v389
        %v398 = vsub.f32 %v361, %v390
        %399 = vrot.lane.b32.xlu0 %v355, 126
        %v400 = vpop.permute.xlu0 %399
        %401 = vrot.lane.b32.xlu0 %v357, 126
        %v402 = vpop.permute.xlu0 %401
        %403 = vrot.lane.b32.xlu0 %v359, 126
        %v404 = vpop.permute.xlu0 %403
        %405 = vrot.lane.b32.xlu0 %v361, 126
        %v406 = vpop.permute.xlu0 %405
        %v411 = vadd.f32 %v354, %v400
        %v412 = vadd.f32 %v355, %v400
        %v413 = vadd.f32 %v356, %v402
        %v414 = vadd.f32 %v357, %v402
        %v415 = vadd.f32 %v358, %v404
        %v416 = vadd.f32 %v359, %v404
        %v417 = vadd.f32 %v360, %v406
        %v418 = vadd.f32 %v361, %v406
        %v419 = vmul.f32 %v355, 2.0
        %v420 = vmul.f32 %v357, 2.0
        %v421 = vmul.f32 %v359, 2.0
        %v422 = vmul.f32 %v361, 2.0
        %427 = vrot.lane.b32.xlu0 %v419, 127
        %v428 = vpop.permute.xlu0 %427
        %429 = vrot.lane.b32.xlu0 %v420, 127
        %v430 = vpop.permute.xlu0 %429
        %431 = vrot.lane.b32.xlu0 %v421, 127
        %v432 = vpop.permute.xlu0 %431
        %433 = vrot.lane.b32.xlu0 %v422, 127
        %v434 = vpop.permute.xlu0 %433
        %v439 = vadd.f32 %v411, %v428
        %v440 = vadd.f32 %v412, %v428
        %v441 = vadd.f32 %v413, %v430
        %v442 = vadd.f32 %v414, %v430
        %v443 = vadd.f32 %v415, %v432
        %v444 = vadd.f32 %v416, %v432
        %v445 = vadd.f32 %v417, %v434
        %v446 = vadd.f32 %v418, %v434
        %vm450 = vcmask 1045504
        %v451 = vrot.slane %v396, 2
        %v452 = vrot.slane %v397, 2
        %v453 = vsel %vm450, %v451, %v452
        %v454 = vrot.slane %v398, 2
        %v455 = vsel %vm450, %v452, %v454
        %v459 = vadd.f32 %v395, %v451
        %v460 = vadd.f32 %v396, %v453
        %v461 = vadd.f32 %v397, %v455
        %v462 = vmul.f32 %v396, 2.0
        %v463 = vmul.f32 %v397, 2.0
        %vm466 = vcmask 1046528
        %v467 = vrot.slane %v462, 1
        %v468 = vrot.slane %v463, 1
        %v469 = vsel %vm466, %v467, %v468
        %v473 = vadd.f32 %v459, %v467
        %v474 = vadd.f32 %v460, %v469
        %v475 = vadd.f32 %v461, %v468
        %v482 = vrot.slane %v441, 2
        %v483 = vrot.slane %v442, 2
        %v484 = vrot.slane %v443, 2
        %v485 = vsel %vm450, %v482, %v484
        %v486 = vrot.slane %v444, 2
        %v487 = vsel %vm450, %v483, %v486
        %v488 = vrot.slane %v445, 2
        %v489 = vsel %vm450, %v484, %v488
        %v490 = vrot.slane %v446, 2
        %v491 = vsel %vm450, %v486, %v490
        %v498 = vsub.f32 %v439, %v482
        %v499 = vsub.f32 %v440, %v483
        %v500 = vsub.f32 %v441, %v485
        %v501 = vsub.f32 %v442, %v487
        %v502 = vsub.f32 %v443, %v489
        %v503 = vsub.f32 %v444, %v491
        %v504 = vand.u32 2147483647, %v473
        %v505 = vand.u32 2147483647, %v474
        %v506 = vand.u32 2147483647, %v475
        %v507 = vand.u32 2147483647, %v498
        %v508 = vand.u32 2147483647, %v499
        %v509 = vand.u32 2147483647, %v500
        %v510 = vand.u32 2147483647, %v501
        %v511 = vand.u32 2147483647, %v502
        %v512 = vand.u32 2147483647, %v503
        %519 = vrot.lane.b32.xlu0 %v507, 2
        %v520 = vpop.permute.xlu0 %519
        %521 = vrot.lane.b32.xlu0 %v508, 2
        %v522 = vpop.permute.xlu0 %521
        %523 = vrot.lane.b32.xlu0 %v509, 2
        %v524 = vpop.permute.xlu0 %523
        %525 = vrot.lane.b32.xlu0 %v510, 2
        %v526 = vpop.permute.xlu0 %525
        %527 = vrot.lane.b32.xlu0 %v511, 2
        %v528 = vpop.permute.xlu0 %527
        %529 = vrot.lane.b32.xlu0 %v512, 2
        %v530 = vpop.permute.xlu0 %529
        %v531 = vsel %vm386, %v520, %v522
        %v532 = vsel %vm386, %v524, %v526
        %v533 = vsel %vm386, %v528, %v530
        %v537 = vadd.f32 %v504, %v531
        %v538 = vadd.f32 %v505, %v532
        %v539 = vadd.f32 %v506, %v533
        %543 = vrot.lane.b32.xlu0 %v537, 127
        %v544 = vpop.permute.xlu0 %543
        %545 = vrot.lane.b32.xlu0 %v538, 127
        %v546 = vpop.permute.xlu0 %545
        %547 = vrot.lane.b32.xlu0 %v539, 127
        %v548 = vpop.permute.xlu0 %547
        %vm552 = vcmask 130055
        %553 = vst.msk [vmem:[%s309 - $0x7] sm:$0x80] %vm552, %v544
        %554 = vst.msk [vmem:[%s309 + $0x1] sm:$0xff] %vm351, %v546
        %vm555 = vcmask 129024
        %556 = vst.msk [vmem:[%s309 + $0x9] sm:$0x7f] %vm555, %v548
        %s557 = sand.u32 %s145, 1
        %s558 = scalar_lea.sflag [#allocation5], %s557
        %s559 = sand.u32 %s145, 1
        %s560 = smul.addr %s559, 16
        %s561 = scalar_lea.vmem [#allocation9], %s560
        // Predicated region
        $region45: #{tpu_custom_call.1} parent=31 // pred_check
          %p562 = pneg %p155
        $region46: #{tpu_custom_call.1} parent=31 // pred_check_branch
          %564 = sbr.rel (%p562) target = $region48
        $region47: #{tpu_custom_call.1} parent=31 // pred_region
          %s565 = smul.u32 2, %s28
          %s567 = ssub.s32 256, 256
          %568 = vsyncadd %s558, %s567
          %s569 = smul.addr %s27, 2
          %s570 = sadd.s32 %s565, %s569
          %s571 = smul.addr %s570, 128
          %s572 = scalar_lea.hbm %s3, %s571
          %s573 = sshll.u32 %s561, 4
          %s574 = int_to_ptr.vmem [resolvable:$true] %s573
          %579 = dma.vmem_to_hbm [thread:$0]  %s574, 256, %s572, %s558, 128, 128, 8
        $region48: #{tpu_custom_call.1} parent=31 // pred_fallthru
          _
      $region32: #{tpu_custom_call.1} parent=5 // pred_fallthru
        _
      %p580 = scmp.le.s32.totalorder 2, %s18
      // Predicated region
      $region49: #{tpu_custom_call.1} parent=5 // pred_check
        %p581 = pneg %p580
      $region50: #{tpu_custom_call.1} parent=5 // pred_check_branch
        %583 = sbr.rel (%p581) target = $region52
      $region51: #{tpu_custom_call.1} parent=5 // pred_region
        %s584 = ssub.s32 %s18, 2
        // Predicated region
        $region53: #{tpu_custom_call.1} parent=51 // pred_check
          %p585 = pneg %p161
        $region54: #{tpu_custom_call.1} parent=51 // pred_check_branch
          %587 = sbr.rel (%p585) target = $region56
        $region55: #{tpu_custom_call.1} parent=51 // pred_region
          %s588 = sand.u32 %s146, 1
          %s589 = scalar_lea.sflag [#allocation5], %s588
          %s590 = sand.u32 %s146, 1
          %s591 = smul.addr %s590, 16
          %s592 = scalar_lea.vmem [#allocation9], %s591
          %593 = dma.done %s589, 256
        $region56: #{tpu_custom_call.1} parent=51 // pred_fallthru
          _
      $region52: #{tpu_custom_call.1} parent=5 // pred_fallthru
        _
    $region6: #{tpu_custom_call.1} parent=1 // loop_footer
      %s22 = sadd.s32 1, %s18
    $region7: #{tpu_custom_call.1} parent=1 // loop_footer_branch
      %17 = sbr.rel target = $region3
    $region8: #{tpu_custom_call.1} parent=1 // loop_exit
      _
    %594 = vsyncpa [#allocation4], 1
    %s595 = scalar_lea.sflag [#allocation4], 1
    %596 = vsyncpa %s595, 1
    %597 = vsyncpa [#allocation7], 1
    %s598 = scalar_lea.sflag [#allocation7], 1
    %599 = vsyncpa %s598, 1
    %600 = vsyncpa [#allocation5], 1
    %s601 = scalar_lea.sflag [#allocation5], 1
    %602 = vsyncpa %s601, 1

</llo_original>
